<compile_context>
chip_gen: v7x
topology: tpu7x:2x2x1
jax: 0.10.0
libtpu: 0.0.40
codegen_flags: <defaults>
</compile_context>

<pallas_src>
import functools

import jax
import jax.numpy as jnp
from jax import lax
from jax.experimental import pallas as pl
from jax.experimental.pallas import tpu as pltpu


def _round_up(x, m):
    return x + (-x) % m


def _largest_divisor_tile(dim, candidates):
    for c in candidates:
        if dim % c == 0:
            return c
    return dim


def _vmem_limit_bytes():
    """Generation-dependent scoped-VMEM limit (v5e/v6e: 96 MiB, v7x: 48 MiB)."""
    try:
        info = pltpu.get_tpu_info()
        cap = getattr(info, "vmem_capacity_bytes", None)
        if cap:
            return int(min(96 * 2**20, max(32 * 2**20, (int(cap) * 3) // 4)))
    except Exception:
        pass
    return 48 * 2**20  # safe on every generation


_VMEM_LIMIT = _vmem_limit_bytes()


# ----------------------------------------------------------------------------
# Pallas kernel 1: tiled matmul + bias (+ optional ReLU), f32 accumulator
# ----------------------------------------------------------------------------
def _mm_bias_kernel(a_ref, w_ref, b_ref, o_ref, acc_ref, *, relu):
    @pl.when(pl.program_id(2) == 0)
    def _init():
        acc_ref[...] = jnp.zeros_like(acc_ref)

    acc_ref[...] += jnp.dot(a_ref[...], w_ref[...],
                            preferred_element_type=jnp.float32)

    @pl.when(pl.program_id(2) == pl.num_programs(2) - 1)
    def _finalize():
        acc = acc_ref[...] + b_ref[...]
        if relu:
            acc = jnp.maximum(acc, 0.0)
        o_ref[...] = acc.astype(o_ref.dtype)


def matmul_bias(a, layer, relu=False, out_dtype=jnp.bfloat16):
    """a: [M, K] @ pre-packed layer (bf16 weight [Kp, Np], f32 bias [1, Np])."""
    w, b, N = layer["w"], layer["b"], layer["n"]
    M, K = a.shape
    Kp, Np = w.shape

    big = _VMEM_LIMIT >= 80 * 2**20
    tm_cap = 1024 if big else 512
    tk_cands = (2048, 1024, 512, 256, 128) if big else (1024, 512, 256, 128)

    if M <= tm_cap:
        Mp = tm = _round_up(M, 8)
    else:
        Mp, tm = _round_up(M, tm_cap), tm_cap
    tn = _largest_divisor_tile(Np, (512, 256, 128))
    tk = _largest_divisor_tile(Kp, tk_cands)

    # v7x megacore: keep at least 2 blocks on a parallel axis when cheap.
    if (Mp // tm) * (Np // tn) == 1 and Np % 256 == 0:
        tn = Np // 2

    a_p = a
    if a_p.shape != (Mp, Kp):
        a_p = jnp.pad(a_p, ((0, Mp - M), (0, Kp - K)))
    a_p = a_p.astype(jnp.bfloat16)

    out = pl.pallas_call(
        functools.partial(_mm_bias_kernel, relu=relu),
        grid=(Mp // tm, Np // tn, Kp // tk),
        in_specs=[
            pl.BlockSpec((tm, tk), lambda i, j, k: (i, k)),
            pl.BlockSpec((tk, tn), lambda i, j, k: (k, j)),
            pl.BlockSpec((1, tn), lambda i, j, k: (0, j)),
        ],
        out_specs=pl.BlockSpec((tm, tn), lambda i, j, k: (i, j)),
        out_shape=jax.ShapeDtypeStruct((Mp, Np), out_dtype),
        scratch_shapes=[pltpu.VMEM((tm, tn), jnp.float32)],
        compiler_params=pltpu.CompilerParams(
            dimension_semantics=("parallel", "parallel", "arbitrary"),
            vmem_limit_bytes=_VMEM_LIMIT),
    )(a_p, w, b)
    if (Mp, Np) != (M, N):
        out = out[:M, :N]
    return out


# ----------------------------------------------------------------------------
# Pallas kernel 2: fully fused residual-VQ group
#   in-proj -> 8-quantizer residual chain -> out-proj, all VMEM-resident.
# ----------------------------------------------------------------------------
def _rvq_group_kernel(x_ref, w_in_ref, b_in_ref, w_out_ref, b_out_ref,
                      cb_ref, cbt_ref, csq_ref, mask_ref,
                      h_ref, idx_ref, loss_ref, *, num_q, codebook_size):
    tm = x_ref.shape[0]
    K = codebook_size
    mask = mask_ref[...]                                   # [tm, 1] f32

    # In-projection (x is [tm, d] bf16, w_in [d, Dc] bf16) -> f32 residual.
    z = jnp.dot(x_ref[...], w_in_ref[...],
                preferred_element_type=jnp.float32) + b_in_ref[...]

    residual = z                                           # [tm, Dc] f32
    quant = jnp.zeros_like(z)

    lane_q = lax.broadcasted_iota(jnp.int32, (tm, num_q), 1)
    idx_slab = jnp.zeros((tm, num_q), jnp.int32)
    loss_vals = []

    for q in range(num_q):                                 # unrolled chain
        c_t = cbt_ref[q]                                   # [Dc, K] bf16
        c = cb_ref[q]                                      # [K, Dc] bf16
        # Natural-orientation score matmul (pre-transposed codebook copy).
        scores = jnp.dot(residual.astype(jnp.bfloat16), c_t,
                         preferred_element_type=jnp.float32)   # [tm, K]
        dist = csq_ref[q] - 2.0 * scores                   # ||c||^2 - 2<r,c>
        k_iota = lax.broadcasted_iota(jnp.int32, dist.shape, 1)
        min_d = jnp.min(dist, axis=-1, keepdims=True)
        idx = jnp.min(jnp.where(dist <= min_d, k_iota, K),
                      axis=-1, keepdims=True)              # first argmin
        onehot = (k_iota == idx).astype(jnp.bfloat16)
        # TODO(synk): on v5e the RVQ kernel is MXU-bound; a VMEM row gather for
        #             `code` would beat this one-hot matmul there.
        code = jnp.dot(onehot, c, preferred_element_type=jnp.float32)
        err = residual - code
        # TODO(synk): loss reduction = masked mean over positions of the summed
        #             squared error (verify factor-of-Dc vs F.mse_loss 'mean').
        loss_vals.append(jnp.sum(jnp.sum(err * err, axis=-1, keepdims=True) * mask))
        quant = quant + code
        residual = err
        idx_slab = jnp.where(lane_q == q,
                             jnp.broadcast_to(idx, (tm, num_q)), idx_slab)

    # Out-projection: quantized [tm, Dc] -> hidden [tm, d].
    hidden = jnp.dot(quant.astype(jnp.bfloat16), w_out_ref[...],
                     preferred_element_type=jnp.float32) + b_out_ref[...]

    h_ref[...] = hidden.astype(h_ref.dtype)
    idx_ref[...] = idx_slab                                # compact [tm, num_q]

    row8 = lax.broadcasted_iota(jnp.int32, (8, num_q), 0)
    col8 = lax.broadcasted_iota(jnp.int32, (8, num_q), 1)
    loss_slab = jnp.zeros((8, num_q), jnp.float32)
    for q in range(num_q):
        loss_slab = jnp.where((row8 == 0) & (col8 == q), loss_vals[q], loss_slab)
    loss_ref[...] = loss_slab[None]


def grouped_residual_vq(p_vq, x, mask):
    """x: [B, T, dim] channels-last, mask: [B, T] bool.

    Returns per-group hidden [G, B, T, d], indices [G, B, T, Q], commit [G, Q].
    """
    B, T, dim = x.shape
    G = p_vq["groups"]
    Q = p_vq["num_quantizers"]
    Dc = p_vq["codebook_dim"]
    K = p_vq["codebook_size"]
    d = p_vq["dim_per_group"]
    M = B * T

    mflat = mask.reshape(M, 1).astype(jnp.float32)
    denom = jnp.maximum(jnp.sum(mflat), 1.0)

    # Group-major layout [G, M, d] (tiny copy: dim is only 2*n_latent wide).
    xg = x.reshape(M, G, d).transpose(1, 0, 2).astype(jnp.bfloat16)

    if M <= 512:
        Mp = tm = _round_up(M, 8)
    else:
        Mp, tm = _round_up(M, 512), 512
    if Mp != M:
        xg = jnp.pad(xg, ((0, 0), (0, Mp - M), (0, 0)))
        mflat_p = jnp.pad(mflat, ((0, Mp - M), (0, 0)))
    else:
        mflat_p = mflat
    n_mtiles = Mp // tm

    hidden, idx, loss_part = pl.pallas_call(
        functools.partial(_rvq_group_kernel, num_q=Q, codebook_size=K),
        grid=(G, n_mtiles),
        in_specs=[
            pl.BlockSpec((None, tm, d), lambda g, m: (g, m, 0)),
            pl.BlockSpec((None, d, Dc), lambda g, m: (g, 0, 0)),
            pl.BlockSpec((None, 1, Dc), lambda g, m: (g, 0, 0)),
            pl.BlockSpec((None, Dc, d), lambda g, m: (g, 0, 0)),
            pl.BlockSpec((None, 1, d), lambda g, m: (g, 0, 0)),
            pl.BlockSpec((None, Q, K, Dc), lambda g, m: (g, 0, 0, 0)),
            pl.BlockSpec((None, Q, Dc, K), lambda g, m: (g, 0, 0, 0)),
            pl.BlockSpec((None, Q, 1, K), lambda g, m: (g, 0, 0, 0)),
            pl.BlockSpec((tm, 1), lambda g, m: (m, 0)),
        ],
        out_specs=(
            pl.BlockSpec((None, tm, d), lambda g, m: (g, m, 0)),
            pl.BlockSpec((None, tm, Q), lambda g, m: (g, m, 0)),
            pl.BlockSpec((None, 1, 8, Q), lambda g, m: (g, m, 0, 0)),
        ),
        out_shape=(
            jax.ShapeDtypeStruct((G, Mp, d), jnp.float32),
            jax.ShapeDtypeStruct((G, Mp, Q), jnp.int32),
            jax.ShapeDtypeStruct((G, n_mtiles, 8, Q), jnp.float32),
        ),
        compiler_params=pltpu.CompilerParams(
            dimension_semantics=("parallel", "parallel"),
            vmem_limit_bytes=_VMEM_LIMIT),
    )(xg, p_vq["w_in"], p_vq["b_in"], p_vq["w_out"], p_vq["b_out"],
      p_vq["cb"], p_vq["cbt"], p_vq["csq"], mflat_p)

    hidden_groups = hidden[:, :M, :].reshape(G, B, T, d)
    all_indices = idx[:, :M, :].reshape(G, B, T, Q)
    commit_losses = jnp.sum(loss_part[:, :, 0, :], axis=1) / denom   # [G, Q]
    return hidden_groups, all_indices, commit_losses


# ----------------------------------------------------------------------------
# Conv1d, channels-last im2col (bf16 patches) + Pallas matmul
# ----------------------------------------------------------------------------
def conv1d(x, layer, relu=False, out_dtype=jnp.bfloat16):
    """x: [B, T, Cin] channels-last -> [B, Tout, Cout]."""
    B, T, Cin = x.shape
    k, s, p, Cout = layer["ksize"], layer["stride"], layer["pad"], layer["cout"]
    x = x.astype(jnp.bfloat16)
    if k == 1 and s == 1 and p == 0:
        patches, Tout = x, T
    else:
        xp = jnp.pad(x, ((0, 0), (p, p), (0, 0)))
        Tout = (T + 2 * p - k) // s + 1
        # TODO(synk): fold the k taps into the Pallas matmul itself (halo'd A
        #             BlockSpec / tap grid axis) to avoid this k-fold patch
        #             materialization in HBM.
        taps = [lax.slice(xp, (0, j, 0), (B, j + (Tout - 1) * s + 1, Cin), (1, s, 1))
                for j in range(k)]
        patches = jnp.concatenate(taps, axis=-1)            # [B, Tout, k*Cin]
    out = matmul_bias(patches.reshape(B * Tout, k * Cin), layer,
                      relu=relu, out_dtype=out_dtype)
    return out.reshape(B, Tout, Cout)


# ----------------------------------------------------------------------------
# Parameter packing (pad/cast/transpose once at init, not per call)
# ----------------------------------------------------------------------------
def _pack_matmul(w, b):
    K, N = w.shape
    Kp, Np = _round_up(K, 128), _round_up(N, 128)
    return {"w": jnp.pad(w, ((0, Kp - K), (0, Np - N))).astype(jnp.bfloat16),
            "b": jnp.pad(b.reshape(1, N), ((0, 0), (0, Np - N))).astype(jnp.float32),
            "k": K, "n": N}


def _pack_conv(w, b, stride, padding):
    """w: [Cout, Cin, k] PyTorch layout -> tap-major channels-last matmul weight."""
    Cout, Cin, k = w.shape
    wm = jnp.transpose(w, (2, 1, 0)).reshape(k * Cin, Cout)
    d = _pack_matmul(wm, b)
    d.update({"cin": Cin, "cout": Cout, "ksize": k, "stride": stride, "pad": padding})
    return d


def init_params(key, n_feat, n_latent, strides, n_kernel=7, hidden=32,
                codebook_dim=256, codebook_size=512, num_quantizers=8, groups=2):
    keys = iter(jax.random.split(key, 128))

    def nrm(shape, scale=0.05):
        return scale * jax.random.normal(next(keys), shape, jnp.float32)

    p = {"n_latent": n_latent}
    enc, cin = [], n_feat
    for s in strides:
        enc.append(_pack_conv(nrm((hidden, cin, n_kernel)),
                              jnp.zeros((hidden,), jnp.float32),
                              stride=s, padding=(n_kernel - 1) // 2))
        cin = hidden
    p["enc_convs"] = enc
    # Fused global/local 1x1 heads: hidden -> [g-head | l-head]
    p["enc_heads"] = _pack_conv(nrm((2 * n_latent, hidden, 1)),
                                jnp.zeros((2 * n_latent,), jnp.float32),
                                stride=1, padding=0)
    p["dec_conv1"] = _pack_conv(nrm((hidden, n_latent, n_kernel)),
                                jnp.zeros((hidden,), jnp.float32),
                                stride=1, padding=(n_kernel - 1) // 2)
    p["dec_conv2"] = _pack_conv(nrm((n_feat, hidden, n_kernel)),
                                jnp.zeros((n_feat,), jnp.float32),
                                stride=1, padding=(n_kernel - 1) // 2)
    up = 1
    for s in strides:
        up *= s
    p["up_factor"] = up

    # Grouped residual VQ: per-group projections + stacked codebooks (both
    # orientations pre-computed: [K, Dc] for the code lookup, [Dc, K] for the
    # score matmul) and pre-computed ||c||^2.
    d = 2 * n_latent // groups
    codebooks = jax.random.normal(
        next(keys), (groups, num_quantizers, codebook_size, codebook_dim), jnp.float32)
    cb = codebooks.astype(jnp.bfloat16)
    cbt = jnp.transpose(cb, (0, 1, 3, 2))
    csq = jnp.sum(cb.astype(jnp.float32) ** 2, axis=-1, keepdims=True)
    csq = jnp.transpose(csq, (0, 1, 3, 2))                  # [G, Q, 1, K] f32
    # TODO(synk): k-means init, EMA updates, dead-code refresh, quantize-dropout
    #             and shared_codebook are training-time features not reproduced.
    p["vq"] = {"groups": groups, "num_quantizers": num_quantizers,
               "codebook_dim": codebook_dim, "codebook_size": codebook_size,
               "dim_per_group": d,
               "w_in": nrm((groups, d, codebook_dim)).astype(jnp.bfloat16),
               "b_in": jnp.zeros((groups, 1, codebook_dim), jnp.float32),
               "w_out": nrm((groups, codebook_dim, d)).astype(jnp.bfloat16),
               "b_out": jnp.zeros((groups, 1, d), jnp.float32),
               "cb": cb, "cbt": cbt, "csq": csq}
    return p


# ----------------------------------------------------------------------------
# Encoder / Decoder / full forward (all channels-last internally)
# ----------------------------------------------------------------------------
def encoder_fwd(p, x_tc, mask):
    # TODO(synk): LSTM / cyclic layers and dropout of the original Encoder are
    #             not reproduced (source not provided); strided convs + ReLU.
    h, m = x_tc, mask
    for layer in p["enc_convs"]:
        h = conv1d(h, layer, relu=True, out_dtype=jnp.bfloat16)
        m = m[:, :, ::layer["stride"]]
    heads = conv1d(h, p["enc_heads"], relu=False, out_dtype=jnp.bfloat16)
    return heads, m                              # [B, T', 2*n_latent], [B, 1, T']


def decoder_fwd(p, h, up_factor, out_dtype=jnp.float32):
    # TODO(synk): original Decoder not provided; nearest-neighbour upsample +
    #             two convs stand in for the transposed-conv / LSTM stack.
    h = jnp.repeat(h, up_factor, axis=1)                    # upsample time
    h = conv1d(h, p["dec_conv1"], relu=True, out_dtype=jnp.bfloat16)
    h = conv1d(h, p["dec_conv2"], relu=False, out_dtype=out_dtype)
    return h                                                # [B', T, n_feat]


def lscodec_forward(params, x, mask=None):
    B, C, T = x.shape
    if mask is None:
        mask = jnp.ones((B, 1, T), x.dtype)

    x_tc = jnp.transpose(x, (0, 2, 1))                      # single NCT->NTC
    heads, mask_ = encoder_fwd(params, x_tc, mask)

    # heads channels-last == torch.cat([hidden_g^T, hidden_l^T], dim=-1)
    hidden_groups, all_indices, commit_losses = grouped_residual_vq(
        params["vq"], heads, mask_[:, 0, :] > 0)
    hidden_g_q = hidden_groups[0]                           # [B, T', n_latent]
    hidden_l_q = hidden_groups[1]

    # index_g / index_l are computed by the quantizer but unused in forward.
    index_g = jnp.transpose(all_indices[0], (0, 2, 1))
    index_l = jnp.transpose(all_indices[1], (0, 2, 1))
    del index_g, index_l

    # Batch the three decoder passes (sum / global / local) into ONE call.
    h_stack = jnp.concatenate(
        [hidden_g_q + hidden_l_q, hidden_g_q, hidden_l_q], axis=0)
    dec = decoder_fwd(params, h_stack, params["up_factor"])
    dec = jnp.transpose(dec, (0, 2, 1))                     # back to NCT
    mask = mask.astype(dec.dtype)
    output = dec[:B] * mask
    output_g = dec[B:2 * B] * mask
    output_l = dec[2 * B:] * mask
    return output, output_g, output_l, commit_losses


# ----------------------------------------------------------------------------
if __name__ == "__main__":
    key = jax.random.PRNGKey(0)
    k_param, k_x = jax.random.split(key)

    n_feat, n_latent, strides = 4, 8, (2, 2)
    B, T = 2, 16

    params = init_params(k_param, n_feat, n_latent, strides,
                         n_kernel=7, hidden=32, codebook_dim=256,
                         codebook_size=512, num_quantizers=8, groups=2)
    x = jax.random.normal(k_x, (B, n_feat, T), jnp.float32)

    output, output_g, output_l, commit_losses = lscodec_forward(params, x, mask=None)

    jax.block_until_ready((output, output_g, output_l, commit_losses))
    assert output.shape == (B, n_feat, T)
    assert output_g.shape == (B, n_feat, T)
    assert output_l.shape == (B, n_feat, T)
    assert commit_losses.shape == (2, 8)
    print("KERNEL_OK")
</pallas_src>

<mosaic_0001>
module attributes {stable_mosaic.version = 11 : i64} {
  func.func @_mm_bias_kernel(%arg0: i32, %arg1: i32, %arg2: i32, %arg3: memref<16x128xbf16, #tpu.memory_space<vmem>>, %arg4: memref<128x128xbf16, #tpu.memory_space<vmem>>, %arg5: memref<1x128xf32, #tpu.memory_space<vmem>>, %arg6: memref<16x128xbf16, #tpu.memory_space<vmem>>, %arg7: memref<16x128xf32, #tpu.memory_space<vmem>>) attributes {dimension_semantics = [#tpu.dimension_semantics<parallel>, #tpu.dimension_semantics<parallel>, #tpu.dimension_semantics<arbitrary>], iteration_bounds = array<i64: 1, 1, 1>, scalar_prefetch = 0 : i64, scratch_operands = 1 : i64, tpu.core_type = #tpu.core_type<tc>, window_params = [{transform_indices = @transform_0, window_bounds = array<i64: 16, 128>}, {transform_indices = @transform_1, window_bounds = array<i64: 128, 128>}, {transform_indices = @transform_2, window_bounds = array<i64: 1, 128>}, {transform_indices = @transform_3, window_bounds = array<i64: 16, 128>}]} {
    %c0_i32 = arith.constant 0 : i32
    %0 = arith.cmpi eq, %arg2, %c0_i32 : i32
    %1 = arith.extui %0 : i1 to i32
    %c0_i32_0 = arith.constant 0 : i32
    %2 = arith.cmpi ne, %1, %c0_i32_0 : i32
    scf.if %2 {
      %cst_10 = arith.constant 0.000000e+00 : f32
      %12 = vector.broadcast %cst_10 : f32 to vector<16x128xf32>
      %c0_11 = arith.constant 0 : index
      %c0_12 = arith.constant 0 : index
      %13 = vector.load %arg7[%c0_11, %c0_12] : memref<16x128xf32, #tpu.memory_space<vmem>>, vector<16x128xf32>
      tpu.vector_store %arg7[%c0_11, %c0_12], %12 {strides = array<i32>} : memref<16x128xf32, #tpu.memory_space<vmem>>, vector<16x128xf32>,
    } else {
    }
    %c0 = arith.constant 0 : index
    %c0_1 = arith.constant 0 : index
    %3 = vector.load %arg7[%c0, %c0_1] : memref<16x128xf32, #tpu.memory_space<vmem>>, vector<16x128xf32>
    %c0_2 = arith.constant 0 : index
    %c0_3 = arith.constant 0 : index
    %4 = vector.load %arg3[%c0_2, %c0_3] : memref<16x128xbf16, #tpu.memory_space<vmem>>, vector<16x128xbf16>
    %c0_4 = arith.constant 0 : index
    %c0_5 = arith.constant 0 : index
    %5 = vector.load %arg4[%c0_4, %c0_5] : memref<128x128xbf16, #tpu.memory_space<vmem>>, vector<128x128xbf16>
    %cst = arith.constant dense<0.000000e+00> : vector<16x128xf32>
    %6 = tpu.matmul %4, %5, %cst {dimension_numbers = #tpu.dot_dimension_numbers<[1], [0], [0], [1], [0, 0, 1, 1], [], []>} : vector<16x128xbf16>, vector<128x128xbf16>, vector<16x128xf32> -> vector<16x128xf32>
    %7 = arith.addf %3, %6 : vector<16x128xf32>
    %c0_6 = arith.constant 0 : index
    %c0_7 = arith.constant 0 : index
    %8 = vector.load %arg7[%c0_6, %c0_7] : memref<16x128xf32, #tpu.memory_space<vmem>>, vector<16x128xf32>
    tpu.vector_store %arg7[%c0_6, %c0_7], %7 {strides = array<i32>} : memref<16x128xf32, #tpu.memory_space<vmem>>, vector<16x128xf32>,
    %c0_i32_8 = arith.constant 0 : i32
    %9 = arith.cmpi eq, %arg2, %c0_i32_8 : i32
    %10 = arith.extui %9 : i1 to i32
    %c0_i32_9 = arith.constant 0 : i32
    %11 = arith.cmpi ne, %10, %c0_i32_9 : i32
    scf.if %11 {
      %c0_10 = arith.constant 0 : index
      %c0_11 = arith.constant 0 : index
      %12 = vector.load %arg7[%c0_10, %c0_11] : memref<16x128xf32, #tpu.memory_space<vmem>>, vector<16x128xf32>
      %c0_12 = arith.constant 0 : index
      %c0_13 = arith.constant 0 : index
      %13 = vector.load %arg5[%c0_12, %c0_13] : memref<1x128xf32, #tpu.memory_space<vmem>>, vector<1x128xf32>
      %14 = vector.broadcast %13 : vector<1x128xf32> to vector<16x128xf32>
      %15 = arith.addf %12, %14 : vector<16x128xf32>
      %cst_14 = arith.constant 0.000000e+00 : f32
      %16 = vector.broadcast %cst_14 : f32 to vector<16x128xf32>
      %17 = arith.maximumf %15, %16 : vector<16x128xf32>
      %18 = arith.truncf %17 : vector<16x128xf32> to vector<16x128xbf16>
      %c0_15 = arith.constant 0 : index
      %c0_16 = arith.constant 0 : index
      %19 = vector.load %arg6[%c0_15, %c0_16] : memref<16x128xbf16, #tpu.memory_space<vmem>>, vector<16x128xbf16>
      tpu.vector_store %arg6[%c0_15, %c0_16], %18 {strides = array<i32>} : memref<16x128xbf16, #tpu.memory_space<vmem>>, vector<16x128xbf16>,
    } else {
    }
    return
  }
  func.func @transform_0(%arg0: i32, %arg1: i32, %arg2: i32) -> (i32, i32) {
    %c0_i32 = arith.constant 0 : i32
    return %arg0, %arg2 : i32, i32
  }
  func.func @transform_1(%arg0: i32, %arg1: i32, %arg2: i32) -> (i32, i32) {
    %c0_i32 = arith.constant 0 : i32
    return %arg2, %arg1 : i32, i32
  }
  func.func @transform_2(%arg0: i32, %arg1: i32, %arg2: i32) -> (i32, i32) {
    %c0_i32 = arith.constant 0 : i32
    %c0_i32_0 = arith.constant 0 : i32
    return %c0_i32, %arg1 : i32, i32
  }
  func.func @transform_3(%arg0: i32, %arg1: i32, %arg2: i32) -> (i32, i32) {
    %c0_i32 = arith.constant 0 : i32
    return %arg0, %arg1 : i32, i32
  }
}

</mosaic_0001>

<llo_original>
// kernel: tpu_custom_call.1
$region0: #{tpu_custom_call.1}
  #allocation0 [shape = 'u32[]', space=smem, size = 0x4, offset = 0x4, fixed_abs, tag = 'smem constant byte address 0x4 - core index']
  #allocation1 [shape = 'u32[144,128]{1,0:T(1,128)}', space=vmem, size = 0x12000, scoped, tag = 'internal scratch']
  #allocation2 [shape = 'f32[16,128]{1,0:T(8,128)}', space=vmem, size = 0x2000, scoped, tag = 'scratch operand']
  %s0 = inlined_call_operand.hbm [shape: bf16[16,128], index: 0, kind: input, shape index: {}]
  %s1 = inlined_call_operand.hbm [shape: bf16[128,128], index: 1, kind: input, shape index: {}]
  %s2 = inlined_call_operand.vmem [shape: f32[1,128], index: 2, kind: input, shape index: {}]
  %s3 = inlined_call_operand.hbm [shape: bf16[16,128], index: 3, kind: output, shape index: {}]
  %s4 = sld [smem:[#allocation0]]
  $region38: #{tpu_custom_call.1} parent=0
    _
  %s6 = ssub.s32 1, %s4
  %s7 = scalar_select 0, %s6, %s4
  $region1: #{tpu_custom_call.1} parent=0
    #allocation3 [shape = 'u8[4096]{0}', space=vmem, size = 0x1000, scoped, tag = 'input window, operand 0, single buffered']
    #allocation4 [shape = 's32[1]{0}', space=sflag, size = 0x4, scoped, tag = 'scoped memory for tpu_custom_call.1']
    #allocation5 [shape = 's32[1]{0}', space=sflag, size = 0x4, scoped, tag = 'scoped memory for tpu_custom_call.1']
    #allocation6 [shape = 'u8[32768]{0}', space=vmem, size = 0x8000, scoped, tag = 'input window, operand 1, single buffered']
    #allocation7 [shape = 's32[1]{0}', space=sflag, size = 0x4, scoped, tag = 'scoped memory for tpu_custom_call.1']
    #allocation8 [shape = 'u8[4096]{0}', space=vmem, size = 0x1000, scoped, tag = 'output window, operand 0, single buffered']
    %8 = vsyncpa [#allocation4], 0
    %9 = vsyncpa [#allocation7], 0
    %10 = vsyncpa [#allocation5], 0
    // Predicated region
    $region2: #{tpu_custom_call.1} parent=1 // pred_check
      _
    $region3: #{tpu_custom_call.1} parent=1 // pred_check_branch
      %12 = sbr.rel (0) target = $region5
    $region4: #{tpu_custom_call.1} parent=1 // pred_region
      %s14 = ssub.s32 128, 128
      %15 = vsyncadd [#allocation4], %s14
      %s16 = sshll.u32 [#allocation3], 4
      %s17 = int_to_ptr.vmem [resolvable:$true] %s16
      %22 = dma.hbm_to_vmem [thread:$0]  %s0, 128, %s17, [#allocation4], 64, 64, 4
    $region5: #{tpu_custom_call.1} parent=1 // pred_fallthru
      _
    // Predicated region
    $region6: #{tpu_custom_call.1} parent=1 // pred_check
      _
    $region7: #{tpu_custom_call.1} parent=1 // pred_check_branch
      %24 = sbr.rel (0) target = $region9
    $region8: #{tpu_custom_call.1} parent=1 // pred_region
      %s26 = ssub.s32 1024, 1024
      %27 = vsyncadd [#allocation7], %s26
      %s28 = sshll.u32 [#allocation6], 4
      %s29 = int_to_ptr.vmem [resolvable:$true] %s28
      %34 = dma.hbm_to_vmem [thread:$0]  %s1, 1024, %s29, [#allocation7], 64, 64, 4
    $region9: #{tpu_custom_call.1} parent=1 // pred_fallthru
      _
    // Predicated region
    $region10: #{tpu_custom_call.1} parent=1 // pred_check
      _
    $region11: #{tpu_custom_call.1} parent=1 // pred_check_branch
      %36 = sbr.rel (0) target = $region13
    $region12: #{tpu_custom_call.1} parent=1 // pred_region
      _
    $region13: #{tpu_custom_call.1} parent=1 // pred_fallthru
      _
    // Predicated region
    $region14: #{tpu_custom_call.1} parent=1 // pred_check
      _
    $region15: #{tpu_custom_call.1} parent=1 // pred_check_branch
      %38 = sbr.rel (0) target = $region17
    $region16: #{tpu_custom_call.1} parent=1 // pred_region
      %39 = dma.done [#allocation4], 128
    $region17: #{tpu_custom_call.1} parent=1 // pred_fallthru
      _
    // Predicated region
    $region18: #{tpu_custom_call.1} parent=1 // pred_check
      _
    $region19: #{tpu_custom_call.1} parent=1 // pred_check_branch
      %41 = sbr.rel (0) target = $region21
    $region20: #{tpu_custom_call.1} parent=1 // pred_region
      %42 = dma.done [#allocation7], 1024
    $region21: #{tpu_custom_call.1} parent=1 // pred_fallthru
      _
    %p44 = scmp.eq.s32.totalorder 0, 0
    // Predicated region
    $region22: #{tpu_custom_call.1} parent=1 // pred_check
      %p45 = pneg %p44
    $region23: #{tpu_custom_call.1} parent=1 // pred_check_branch
      %47 = sbr.rel (%p45) target = $region25
    $region24: #{tpu_custom_call.1} parent=1 // pred_region
      %48 = vst [vmem:[#allocation2] sm:$0xff] 0.0
      %49 = vst [vmem:[#allocation2 + $0x8] sm:$0xff] 0.0
    $region25: #{tpu_custom_call.1} parent=1 // pred_fallthru
      _
    %v50 = vld [vmem:[#allocation2] sm:$0xff]
    %v51 = vld [vmem:[#allocation2 + $0x8] sm:$0xff]
    %v52 = vld [vmem:[#allocation3] sm:$0xf]
    %v53 = vld [vmem:[#allocation3 + $0x4] sm:$0xf]
    %v54 = vld [vmem:[#allocation6] sm:$0xf]
    %v55 = vld [vmem:[#allocation6 + $0x4] sm:$0xf]
    %v56 = vld [vmem:[#allocation6 + $0x8] sm:$0xf]
    %v57 = vld [vmem:[#allocation6 + $0xc] sm:$0xf]
    %v58 = vld [vmem:[#allocation6 + $0x10] sm:$0xf]
    %v59 = vld [vmem:[#allocation6 + $0x14] sm:$0xf]
    %v60 = vld [vmem:[#allocation6 + $0x18] sm:$0xf]
    %v61 = vld [vmem:[#allocation6 + $0x1c] sm:$0xf]
    %v62 = vld [vmem:[#allocation6 + $0x20] sm:$0xf]
    %v63 = vld [vmem:[#allocation6 + $0x24] sm:$0xf]
    %v64 = vld [vmem:[#allocation6 + $0x28] sm:$0xf]
    %v65 = vld [vmem:[#allocation6 + $0x2c] sm:$0xf]
    %v66 = vld [vmem:[#allocation6 + $0x30] sm:$0xf]
    %v67 = vld [vmem:[#allocation6 + $0x34] sm:$0xf]
    %v68 = vld [vmem:[#allocation6 + $0x38] sm:$0xf]
    %v69 = vld [vmem:[#allocation6 + $0x3c] sm:$0xf]
    %v72 = vunpack.c.l.b16 %v52
    %v73 = vunpack.c.l.b16 %v53
    %v74 = vpack.c.b16 %v73, %v72
    %v92 = vunpack.c.l.b16 %v54
    %v93 = vunpack.c.l.b16 %v55
    %v94 = vunpack.c.l.b16 %v56
    %v95 = vunpack.c.l.b16 %v57
    %v96 = vunpack.c.l.b16 %v58
    %v97 = vunpack.c.l.b16 %v59
    %v98 = vunpack.c.l.b16 %v60
    %v99 = vunpack.c.l.b16 %v61
    %v100 = vunpack.c.l.b16 %v62
    %v101 = vunpack.c.l.b16 %v63
    %v102 = vunpack.c.l.b16 %v64
    %v103 = vunpack.c.l.b16 %v65
    %v104 = vunpack.c.l.b16 %v66
    %v105 = vunpack.c.l.b16 %v67
    %v106 = vunpack.c.l.b16 %v68
    %v107 = vunpack.c.l.b16 %v69
    %v108 = vpack.c.b16 %v93, %v92
    %v109 = vpack.c.b16 %v95, %v94
    %v110 = vpack.c.b16 %v97, %v96
    %v111 = vpack.c.b16 %v99, %v98
    %v112 = vpack.c.b16 %v101, %v100
    %v113 = vpack.c.b16 %v103, %v102
    %v114 = vpack.c.b16 %v105, %v104
    %v115 = vpack.c.b16 %v107, %v106
    %124 = vmatprep.subr.bf16.mxu0 0
    %125 = vmatpush1.bf16.msra.mxu0 %v108
    %126 = vmatprep.subr.bf16.mxu0 0
    %127 = vmatpush1.bf16.msra.mxu0 %v109
    %128 = vmatprep.subr.bf16.mxu0 0
    %129 = vmatpush1.bf16.msra.mxu0 %v110
    %130 = vmatprep.subr.bf16.mxu0 0
    %131 = vmatpush1.bf16.msra.mxu0 %v111
    %132 = vmatprep.subr.bf16.mxu0 0
    %133 = vmatpush1.bf16.msra.mxu0 %v112
    %134 = vmatprep.subr.bf16.mxu0 0
    %135 = vmatpush1.bf16.msra.mxu0 %v113
    %136 = vmatprep.subr.bf16.mxu0 0
    %137 = vmatpush1.bf16.msra.mxu0 %v114
    %138 = vmatprep.subr.bf16.mxu0 0
    %139 = vmatpush1.bf16.msra.mxu0 %v115
    %140 = vmatprep.subr.bf16.mxu0 0
    %141 = vmatpush1.bf16.msra.mxu0 0
    %142 = vmatprep.subr.bf16.mxu0 0
    %143 = vmatpush1.bf16.msra.mxu0 0
    %144 = vmatprep.subr.bf16.mxu0 0
    %145 = vmatpush1.bf16.msra.mxu0 0
    %146 = vmatprep.subr.bf16.mxu0 0
    %147 = vmatpush1.bf16.msra.mxu0 0
    %148 = vmatprep.subr.bf16.mxu0 0
    %149 = vmatpush1.bf16.msra.mxu0 0
    %150 = vmatprep.subr.bf16.mxu0 0
    %151 = vmatpush1.bf16.msra.mxu0 0
    %152 = vmatprep.subr.bf16.mxu0 0
    %153 = vmatpush1.bf16.msra.mxu0 0
    %154 = vmatprep.subr.bf16.mxu0 0
    %155 = vmatpush1.bf16.msra.mxu0 0
    %156 = vmatprep.mubr.bf16.mxu0 0
    %157 = vmatmul.mubr.bf16.gmra.mrb[0].mxu0 %v74
    %v158 = vpop.f32.mrb[0].mxu0
    %v159 = vadd.f32 0.0, %v158
    %v160 = vpop.f32.mrb[0].mxu0
    %v161 = vpop.f32.mrb[0].mxu0
    %v162 = vadd.f32 0.0, %v161
    %v163 = vpop.f32.mrb[0].mxu0
    %164 = vdwg.mxu0
    %v165 = vadd.f32 %v50, %v159
    %v166 = vadd.f32 %v51, %v162
    %167 = vst [vmem:[#allocation2] sm:$0xff] %v165
    %168 = vst [vmem:[#allocation2 + $0x8] sm:$0xff] %v166
    // Predicated region
    $region26: #{tpu_custom_call.1} parent=1 // pred_check
      %p169 = pneg %p44
    $region27: #{tpu_custom_call.1} parent=1 // pred_check_branch
      %171 = sbr.rel (%p169) target = $region29
    $region28: #{tpu_custom_call.1} parent=1 // pred_region
      %v172 = vld [vmem:[#allocation2] sm:$0xff]
      %v173 = vld [vmem:[#allocation2 + $0x8] sm:$0xff]
      %v174 = vld [vmem:[%s2] sm:$0x1]
      %v176 = vlaneseq
      %v177 = vshrl.u32 %v176, 7
      %v178 = vsub.s32 0, %v177
      %v179 = vrot.slane %v174, %v178
      %v181 = vadd.f32 %v172, %v179
      %v182 = vadd.f32 %v173, %v179
      %v183 = vmax.f32 %v181, 0.0
      %v184 = vmax.f32 %v182, 0.0
      %v185 = vpack.c.bf16 %v184, %v183
      %v187 = vunpack.c.l.b16 %v185
      %v188 = vunpack.c.h.b16 %v185
      %v189 = vpack.c.b16 %v187, %v187
      %v190 = vpack.c.b16 %v188, %v188
      %193 = vst [vmem:[#allocation8] sm:$0xf] %v189
      %194 = vst [vmem:[#allocation8 + $0x4] sm:$0xf] %v190
    $region29: #{tpu_custom_call.1} parent=1 // pred_fallthru
      _
    // Predicated region
    $region30: #{tpu_custom_call.1} parent=1 // pred_check
      _
    $region31: #{tpu_custom_call.1} parent=1 // pred_check_branch
      %196 = sbr.rel (0) target = $region33
    $region32: #{tpu_custom_call.1} parent=1 // pred_region
      %s198 = ssub.s32 128, 128
      %199 = vsyncadd [#allocation5], %s198
      %s200 = sshll.u32 [#allocation8], 4
      %s201 = int_to_ptr.vmem [resolvable:$true] %s200
      %206 = dma.vmem_to_hbm [thread:$0]  %s201, 128, %s3, [#allocation5], 64, 64, 4
    $region33: #{tpu_custom_call.1} parent=1 // pred_fallthru
      _
    // Predicated region
    $region34: #{tpu_custom_call.1} parent=1 // pred_check
      _
    $region35: #{tpu_custom_call.1} parent=1 // pred_check_branch
      %208 = sbr.rel (0) target = $region37
    $region36: #{tpu_custom_call.1} parent=1 // pred_region
      %209 = dma.done [#allocation5], 128
    $region37: #{tpu_custom_call.1} parent=1 // pred_fallthru
      _
    %210 = vsyncpa [#allocation4], 1
    %211 = vsyncpa [#allocation7], 1
    %212 = vsyncpa [#allocation5], 1

</llo_original>
